<compile_context>
chip_gen: v6e
topology: v6e:2x2x1
jax: 0.10.0
libtpu: 0.0.40
codegen_flags: <defaults>
</compile_context>

<pallas_src>
import jax
import jax.numpy as jnp
from jax.experimental import pallas as pl
from jax.experimental.pallas import tpu as pltpu


def make_rope_tables(seq_len, embed_dim, table_dtype=jnp.float32):
    """Half-width RoPE tables cos/sin of shape (seq_len, embed_dim // 2)."""
    half = embed_dim // 2
    inv_freq = 1.0 / (10000.0 ** (jnp.arange(half, dtype=jnp.float32) / half))
    pos = jnp.arange(seq_len, dtype=jnp.float32)
    freqs = pos[:, None] * inv_freq[None, :]                  # (S, D/2)
    return jnp.cos(freqs).astype(table_dtype), jnp.sin(freqs).astype(table_dtype)


def _rope_kernel_half(x_ref, cos_ref, sin_ref, o_ref):
    # x_ref, o_ref: (b_blk, ts, D)    cos_ref, sin_ref: (ts, D/2)
    half = cos_ref.shape[-1]
    cos = cos_ref[...].astype(jnp.float32)[None]              # (1, ts, D/2)
    sin = sin_ref[...].astype(jnp.float32)[None]
    x1 = x_ref[:, :, :half].astype(jnp.float32)
    x2 = x_ref[:, :, half:].astype(jnp.float32)
    # Two lane-aligned half stores (this path requires D/2 % 128 == 0).
    o_ref[:, :, :half] = (x1 * cos - x2 * sin).astype(o_ref.dtype)
    o_ref[:, :, half:] = (x2 * cos + x1 * sin).astype(o_ref.dtype)


def _rope_kernel_full(x_ref, cos2_ref, sin2_ref, o_ref):
    # Fallback when D/2 is not a multiple of 128: full-width tables
    # cos2 = [cos, cos], sin2 = [-sin, sin]; swap halves with pltpu.roll
    # (XLU slot, idle in this kernel) and do one full-width lane-dense store.
    d = x_ref.shape[-1]
    x = x_ref[...].astype(jnp.float32)
    rolled = pltpu.roll(x, shift=d // 2, axis=2)              # [x2, x1]
    cos2 = cos2_ref[...].astype(jnp.float32)[None]
    sin2 = sin2_ref[...].astype(jnp.float32)[None]
    o_ref[...] = (x * cos2 + rolled * sin2).astype(o_ref.dtype)


def _pick_tiles(b, s, d, itemsize):
    """Pick (batch_block, seq_tile) so one x block is ~4 MiB (dtype-aware)."""
    target = 4 << 20                                # ~4 MiB of x per block
    row_bytes = max(1, d * itemsize)
    ts = min(s, max(16, target // row_bytes))
    if ts < s:
        ts = max(16, (ts // 16) * 16)               # 16-sublane aligned (bf16 packing)
    n_seq = pl.cdiv(s, ts)
    b_blk = 1
    if n_seq == 1 and b > 1:
        # Whole sequence fits in one tile: fold batch into the block to
        # amortize per-step overhead, but keep >= 2 grid steps so both of
        # v7x's TensorCores get work.
        b_blk = min(max(1, target // max(1, s * row_bytes)), max(1, b // 2))
    return b_blk, ts


def rotary_position_embedding(x, cos=None, sin=None):
    """Apply RoPE to x of shape (batch, seq, embed_dim)."""
    b, s, d = x.shape
    assert d % 2 == 0, "embed_dim must be even for RoPE"
    half = d // 2
    if cos is None or sin is None:
        # Prefer precomputing once outside and passing in (avoids rebuilding
        # and re-streaming the tables on every call).
        table_dtype = jnp.float32 if x.dtype == jnp.float32 else x.dtype
        cos, sin = make_rope_tables(s, d, table_dtype)

    itemsize = jnp.dtype(x.dtype).itemsize
    b_blk, ts = _pick_tiles(b, s, d, itemsize)
    n_seq = pl.cdiv(s, ts)
    n_b = pl.cdiv(b, b_blk)

    lane_aligned = (half % 128) == 0
    if lane_aligned:
        kernel = _rope_kernel_half
        cos_in, sin_in = cos, sin
        tab_last = half
    else:
        kernel = _rope_kernel_full
        cos_in = jnp.concatenate([cos, cos], axis=-1)
        sin_in = jnp.concatenate([-sin, sin], axis=-1)
        tab_last = d

    # Explicit VMEM budget: double-buffered x + out + cos + sin, capped at
    # ~48 MiB so the plan fits v7x's 64 MiB physical VMEM (v5e/v6e have 128).
    tab_itemsize = jnp.dtype(cos_in.dtype).itemsize
    x_block = b_blk * ts * d * itemsize
    tab_block = 2 * ts * tab_last * tab_itemsize
    footprint = 2 * (2 * x_block + tab_block)
    vmem_limit = int(min(48 << 20, max(footprint * 3 // 2, 24 << 20)))

    return pl.pallas_call(
        kernel,
        out_shape=jax.ShapeDtypeStruct((b, s, d), x.dtype),
        # seq-tile axis outer, batch axis inner -> the cos/sin block index is
        # constant across the inner axis (table tile fetched once per seq tile).
        grid=(n_seq, n_b),
        in_specs=[
            pl.BlockSpec((b_blk, ts, d), lambda si, bi: (bi, si, 0)),
            pl.BlockSpec((ts, tab_last), lambda si, bi: (si, 0)),
            pl.BlockSpec((ts, tab_last), lambda si, bi: (si, 0)),
        ],
        out_specs=pl.BlockSpec((b_blk, ts, d), lambda si, bi: (bi, si, 0)),
        compiler_params=pltpu.CompilerParams(
            # Both axes independent -> shardable across v7x's 2 TensorCores.
            dimension_semantics=("parallel", "parallel"),
            vmem_limit_bytes=vmem_limit,
        ),
    )(x, cos_in, sin_in)


def _rope_reference(x, cos, sin):
    # Pure-JAX reference (same split-halves convention, same tables).
    half = x.shape[-1] // 2
    c = cos.astype(jnp.float32)[None]
    s = sin.astype(jnp.float32)[None]
    x1 = x[..., :half].astype(jnp.float32)
    x2 = x[..., half:].astype(jnp.float32)
    lo = x1 * c - x2 * s
    hi = x2 * c + x1 * s
    return jnp.concatenate([lo, hi], axis=-1).astype(x.dtype)


if __name__ == "__main__":
    key = jax.random.PRNGKey(0)
    # Small but lane-dense shapes: D=256 -> each output half is 128 lanes.
    batch, seq, embed_dim = 2, 256, 256
    x = jax.random.normal(key, (batch, seq, embed_dim), dtype=jnp.float32)

    # Precompute tables once (perf: no per-call rebuild / HBM re-stream).
    cos, sin = make_rope_tables(seq, embed_dim, jnp.float32)

    rope = jax.jit(rotary_position_embedding)
    out = jax.block_until_ready(rope(x, cos, sin))

    ref = _rope_reference(x, cos, sin)
    assert out.shape == (batch, seq, embed_dim)
    assert jnp.allclose(out, ref, atol=1e-5, rtol=1e-5), "mismatch vs reference"

    print("KERNEL_OK")
</pallas_src>

<mosaic_0001>
module attributes {stable_mosaic.version = 11 : i64} {
  func.func @_rope_kernel_half(%arg0: i32, %arg1: i32, %arg2: memref<1x256x256xf32, #tpu.memory_space<vmem>>, %arg3: memref<256x128xf32, #tpu.memory_space<vmem>>, %arg4: memref<256x128xf32, #tpu.memory_space<vmem>>, %arg5: memref<1x256x256xf32, #tpu.memory_space<vmem>>) attributes {dimension_semantics = [#tpu.dimension_semantics<parallel>, #tpu.dimension_semantics<parallel>], iteration_bounds = array<i64: 1, 2>, scalar_prefetch = 0 : i64, scratch_operands = 0 : i64, tpu.core_type = #tpu.core_type<tc>, window_params = [{transform_indices = @transform_0, window_bounds = array<i64: 1, 256, 256>}, {transform_indices = @transform_1, window_bounds = array<i64: 256, 128>}, {transform_indices = @transform_2, window_bounds = array<i64: 256, 128>}, {transform_indices = @transform_3, window_bounds = array<i64: 1, 256, 256>}]} {
    %c0 = arith.constant 0 : index
    %c0_0 = arith.constant 0 : index
    %0 = vector.load %arg3[%c0, %c0_0] : memref<256x128xf32, #tpu.memory_space<vmem>>, vector<256x128xf32>
    %1 = vector.shape_cast %0 : vector<256x128xf32> to vector<1x256x128xf32>
    %c0_1 = arith.constant 0 : index
    %c0_2 = arith.constant 0 : index
    %2 = vector.load %arg4[%c0_1, %c0_2] : memref<256x128xf32, #tpu.memory_space<vmem>>, vector<256x128xf32>
    %3 = vector.shape_cast %2 : vector<256x128xf32> to vector<1x256x128xf32>
    %c0_3 = arith.constant 0 : index
    %c0_4 = arith.constant 0 : index
    %c0_5 = arith.constant 0 : index
    %4 = vector.load %arg2[%c0_3, %c0_4, %c0_5] : memref<1x256x256xf32, #tpu.memory_space<vmem>>, vector<1x256x128xf32>
    %c0_6 = arith.constant 0 : index
    %c0_7 = arith.constant 0 : index
    %c128 = arith.constant 128 : index
    %5 = vector.load %arg2[%c0_6, %c0_7, %c128] : memref<1x256x256xf32, #tpu.memory_space<vmem>>, vector<1x256x128xf32>
    %6 = arith.mulf %4, %1 : vector<1x256x128xf32>
    %7 = arith.mulf %5, %3 : vector<1x256x128xf32>
    %8 = arith.subf %6, %7 : vector<1x256x128xf32>
    %c0_8 = arith.constant 0 : index
    %c0_9 = arith.constant 0 : index
    %c0_10 = arith.constant 0 : index
    %9 = vector.load %arg5[%c0_8, %c0_9, %c0_10] : memref<1x256x256xf32, #tpu.memory_space<vmem>>, vector<1x256x128xf32>
    tpu.vector_store %arg5[%c0_8, %c0_9, %c0_10], %8 {strides = array<i32>} : memref<1x256x256xf32, #tpu.memory_space<vmem>>, vector<1x256x128xf32>,
    %10 = arith.mulf %5, %1 : vector<1x256x128xf32>
    %11 = arith.mulf %4, %3 : vector<1x256x128xf32>
    %12 = arith.addf %10, %11 : vector<1x256x128xf32>
    %c0_11 = arith.constant 0 : index
    %c0_12 = arith.constant 0 : index
    %c128_13 = arith.constant 128 : index
    %13 = vector.load %arg5[%c0_11, %c0_12, %c128_13] : memref<1x256x256xf32, #tpu.memory_space<vmem>>, vector<1x256x128xf32>
    tpu.vector_store %arg5[%c0_11, %c0_12, %c128_13], %12 {strides = array<i32>} : memref<1x256x256xf32, #tpu.memory_space<vmem>>, vector<1x256x128xf32>,
    return
  }
  func.func @transform_0(%arg0: i32, %arg1: i32) -> (i32, i32, i32) {
    %c0_i32 = arith.constant 0 : i32
    %c0_i32_0 = arith.constant 0 : i32
    return %arg1, %arg0, %c0_i32 : i32, i32, i32
  }
  func.func @transform_1(%arg0: i32, %arg1: i32) -> (i32, i32) {
    %c0_i32 = arith.constant 0 : i32
    %c0_i32_0 = arith.constant 0 : i32
    return %arg0, %c0_i32 : i32, i32
  }
  func.func @transform_2(%arg0: i32, %arg1: i32) -> (i32, i32) {
    %c0_i32 = arith.constant 0 : i32
    %c0_i32_0 = arith.constant 0 : i32
    return %arg0, %c0_i32 : i32, i32
  }
  func.func @transform_3(%arg0: i32, %arg1: i32) -> (i32, i32, i32) {
    %c0_i32 = arith.constant 0 : i32
    %c0_i32_0 = arith.constant 0 : i32
    return %arg1, %arg0, %c0_i32 : i32, i32, i32
  }
}

</mosaic_0001>

<llo_original>
// kernel: rotary_position_embedding.1
$region0: #{rotary_position_embedding.1}
  #allocation0 [shape = 'u32[]', space=smem, size = 0x4, offset = 0x4, fixed_abs, tag = 'smem constant byte address 0x4 - core index']
  #allocation1 [shape = 'u32[144,128]{1,0:T(1,128)}', space=vmem, size = 0x12000, scoped, tag = 'internal scratch']
  %s0 = inlined_call_operand.hbm [shape: f32[2,256,256], index: 0, kind: input, shape index: {}]
  %s1 = inlined_call_operand.hbm [shape: f32[256,128], index: 1, kind: input, shape index: {}]
  %s2 = inlined_call_operand.hbm [shape: f32[256,128], index: 2, kind: input, shape index: {}]
  %s3 = inlined_call_operand.hbm [shape: f32[2,256,256], index: 3, kind: output, shape index: {}]
  %s4 = sld [smem:[#allocation0]]
  $region57: #{rotary_position_embedding.1} parent=0
    _
  %s6 = ssub.s32 1, %s4
  %s7 = scalar_select 0, %s6, %s4
  $region1: #{rotary_position_embedding.1} parent=0
    #allocation2 [shape = 'u8[524288]{0}', space=vmem, size = 0x80000, scoped, tag = 'input window, operand 0']
    #allocation3 [shape = 's32[2]{0}', space=sflag, size = 0x8, scoped, tag = 'scoped memory for rotary_position_embedding.1']
    #allocation4 [shape = 's32[2]{0}', space=sflag, size = 0x8, scoped, tag = 'scoped memory for rotary_position_embedding.1']
    #allocation5 [shape = 'u8[131072]{0}', space=vmem, size = 0x20000, scoped, tag = 'input window, operand 1, single buffered']
    #allocation6 [shape = 's32[1]{0}', space=sflag, size = 0x4, scoped, tag = 'scoped memory for rotary_position_embedding.1']
    #allocation7 [shape = 'u8[131072]{0}', space=vmem, size = 0x20000, scoped, tag = 'input window, operand 2, single buffered']
    #allocation8 [shape = 'u8[524288]{0}', space=vmem, size = 0x80000, scoped, tag = 'output window, operand 0']
    %8 = vsyncpa [#allocation3], 0
    %s9 = scalar_lea.sflag [#allocation3], 1
    %10 = vsyncpa %s9, 0
    %11 = vsyncpa [#allocation6], 0
    %12 = vsyncpa [#allocation4], 0
    %s13 = scalar_lea.sflag [#allocation4], 1
    %14 = vsyncpa %s13, 0
    loop: start=0, step=1, limit=4
    $region2: #{rotary_position_embedding.1} parent=1 // loop_pre_header
      _
    $region3: #{rotary_position_embedding.1} parent=1 // loop_header
      %s16 = sphi 0, %s20
      %p17 = scmp.ge.s32.totalorder %s16, 4
      %s23 = sphi 0, %s35
      %s24 = sphi 0, %s31
      %s25 = sphi 0, %s23
      %s26 = sphi 0, %s24
      %s27 = sphi 0, %s25
      %s28 = sphi 0, %s26
      %s40 = sphi 0, %s42
      %s43 = sphi 0, %s40
      %s44 = sphi 0, %s43
      %s60 = sphi 0, %s44
      %s66 = sphi 0, %s68
      %s69 = sphi 0, %s66
      %s70 = sphi 0, %s69
      %s86 = sphi 0, %s70
      %s92 = sphi 0, %s94
      %s95 = sphi 0, %s92
      %s96 = sphi 0, %s95
      %s112 = sphi 0, %s96
      %s120 = sphi 0, %s122
      %s123 = sphi 0, %s120
      %s124 = sphi 0, %s123
      %s140 = sphi 0, %s124
    $region4: #{rotary_position_embedding.1} parent=1 // loop_header_branch
      %19 = sbr.rel (%p17) target = $region8
    $region5: #{rotary_position_embedding.1} parent=1 // loop_body
      %s21 = ssub.s32 %s16, 1
      %s22 = ssub.s32 %s16, 2
      %s29 = sadd.s32 1, %s24
      %p30 = scmp.ge.s32.totalorder %s29, 2
      %s31 = scalar_select %p30, 0, %s29
      %s32 = sadd.s32 1, %s23
      %s33 = scalar_select %p30, %s32, %s23
      %p34 = scmp.ge.s32.totalorder %s33, 1
      %s35 = scalar_select %p34, 0, %s33
      %s36 = ssub.s32 %s24, %s31
      %s37 = ssub.s32 %s23, %s35
      %s38 = sor.u32 %s36, %s37
      %p39 = scmp.eq.s32.totalorder %s38, 0
      %s41 = sadd.s32 %s40, 1
      %s42 = scalar_select %p39, %s40, %s41
      %p45 = pneg %p39
      %p46 = scmp.eq.s32.totalorder %s16, 1
      %p47 = por %p45, %p46
      %p48 = scmp.ne.s32.totalorder %s40, %s43
      %p49 = scmp.eq.s32.totalorder %s16, 0
      %p50 = por %p48, %p49
      %p51 = scmp.ne.s32.totalorder %s40, %s43
      %p52 = scmp.eq.s32.totalorder %s21, 1
      %p53 = por %p51, %p52
      %p54 = scmp.ne.s32.totalorder %s43, %s44
      %p55 = scmp.eq.s32.totalorder %s21, 0
      %p56 = por %p54, %p55
      %p57 = scmp.ne.s32.totalorder %s43, %s44
      %p58 = scmp.eq.s32.totalorder %s22, 1
      %p59 = por %p57, %p58
      %p61 = scmp.ne.s32.totalorder %s44, %s60
      %p62 = scmp.eq.s32.totalorder %s22, 0
      %p63 = por %p61, %p62
      %s64 = ssub.s32 %s23, %s35
      %p65 = scmp.eq.s32.totalorder %s64, 0
      %s67 = sadd.s32 %s66, 1
      %s68 = scalar_select %p65, %s66, %s67
      %p71 = pneg %p65
      %p72 = scmp.eq.s32.totalorder %s16, 1
      %p73 = por %p71, %p72
      %p74 = scmp.ne.s32.totalorder %s66, %s69
      %p75 = scmp.eq.s32.totalorder %s16, 0
      %p76 = por %p74, %p75
      %p77 = scmp.ne.s32.totalorder %s66, %s69
      %p78 = scmp.eq.s32.totalorder %s21, 1
      %p79 = por %p77, %p78
      %p80 = scmp.ne.s32.totalorder %s69, %s70
      %p81 = scmp.eq.s32.totalorder %s21, 0
      %p82 = por %p80, %p81
      %p83 = scmp.ne.s32.totalorder %s69, %s70
      %p84 = scmp.eq.s32.totalorder %s22, 1
      %p85 = por %p83, %p84
      %p87 = scmp.ne.s32.totalorder %s70, %s86
      %p88 = scmp.eq.s32.totalorder %s22, 0
      %p89 = por %p87, %p88
      %s90 = ssub.s32 %s23, %s35
      %p91 = scmp.eq.s32.totalorder %s90, 0
      %s93 = sadd.s32 %s92, 1
      %s94 = scalar_select %p91, %s92, %s93
      %p97 = pneg %p91
      %p98 = scmp.eq.s32.totalorder %s16, 1
      %p99 = por %p97, %p98
      %p100 = scmp.ne.s32.totalorder %s92, %s95
      %p101 = scmp.eq.s32.totalorder %s16, 0
      %p102 = por %p100, %p101
      %p103 = scmp.ne.s32.totalorder %s92, %s95
      %p104 = scmp.eq.s32.totalorder %s21, 1
      %p105 = por %p103, %p104
      %p106 = scmp.ne.s32.totalorder %s95, %s96
      %p107 = scmp.eq.s32.totalorder %s21, 0
      %p108 = por %p106, %p107
      %p109 = scmp.ne.s32.totalorder %s95, %s96
      %p110 = scmp.eq.s32.totalorder %s22, 1
      %p111 = por %p109, %p110
      %p113 = scmp.ne.s32.totalorder %s96, %s112
      %p114 = scmp.eq.s32.totalorder %s22, 0
      %p115 = por %p113, %p114
      %s116 = ssub.s32 %s24, %s31
      %s117 = ssub.s32 %s23, %s35
      %s118 = sor.u32 %s116, %s117
      %p119 = scmp.eq.s32.totalorder %s118, 0
      %s121 = sadd.s32 %s120, 1
      %s122 = scalar_select %p119, %s120, %s121
      %p125 = pneg %p119
      %p126 = scmp.eq.s32.totalorder %s16, 1
      %p127 = por %p125, %p126
      %p128 = scmp.ne.s32.totalorder %s120, %s123
      %p129 = scmp.eq.s32.totalorder %s16, 0
      %p130 = por %p128, %p129
      %p131 = scmp.ne.s32.totalorder %s120, %s123
      %p132 = scmp.eq.s32.totalorder %s21, 1
      %p133 = por %p131, %p132
      %p134 = scmp.ne.s32.totalorder %s123, %s124
      %p135 = scmp.eq.s32.totalorder %s21, 0
      %p136 = por %p134, %p135
      %p137 = scmp.ne.s32.totalorder %s123, %s124
      %p138 = scmp.eq.s32.totalorder %s22, 1
      %p139 = por %p137, %p138
      %p141 = scmp.ne.s32.totalorder %s124, %s140
      %p142 = scmp.eq.s32.totalorder %s22, 0
      %p143 = por %p141, %p142
      %p144 = scmp.le.s32.totalorder 1, %s16
      %p145 = scmp.lt.s32.totalorder %s16, 3
      %p146 = pnand %p144, %p145
      %p147 = pneg %p146
      // Predicated region
      $region9: #{rotary_position_embedding.1} parent=5 // pred_check
        _
      $region10: #{rotary_position_embedding.1} parent=5 // pred_check_branch
        %149 = sbr.rel (%p146) target = $region12
      $region11: #{rotary_position_embedding.1} parent=5 // pred_region
        %s150 = ssub.s32 %s16, 1
        // Predicated region
        $region13: #{rotary_position_embedding.1} parent=11 // pred_check
          %p151 = pneg %p82
        $region14: #{rotary_position_embedding.1} parent=11 // pred_check_branch
          %153 = sbr.rel (%p151) target = $region16
        $region15: #{rotary_position_embedding.1} parent=11 // pred_region
          %s154 = smul.u32 32, %s25
          %s156 = ssub.s32 4096, 4096
          %157 = vsyncadd [#allocation6], %s156
          %s158 = smul.addr %s154, 128
          %s159 = scalar_lea.hbm %s1, %s158
          %s160 = sshll.u32 [#allocation5], 4
          %s161 = int_to_ptr.vmem [resolvable:$true] %s160
          %166 = dma.hbm_to_vmem [thread:$0]  %s159, 4096, %s161, [#allocation6], 128, 128, 8
        $region16: #{rotary_position_embedding.1} parent=11 // pred_fallthru
          _
        // Predicated region
        $region17: #{rotary_position_embedding.1} parent=11 // pred_check
          %p167 = pneg %p108
        $region18: #{rotary_position_embedding.1} parent=11 // pred_check_branch
          %169 = sbr.rel (%p167) target = $region20
        $region19: #{rotary_position_embedding.1} parent=11 // pred_region
          %s170 = smul.u32 32, %s25
          %s172 = ssub.s32 4096, 4096
          %173 = vsyncadd [#allocation6], %s172
          %s174 = smul.addr %s170, 128
          %s175 = scalar_lea.hbm %s2, %s174
          %s176 = sshll.u32 [#allocation7], 4
          %s177 = int_to_ptr.vmem [resolvable:$true] %s176
          %182 = dma.hbm_to_vmem [thread:$0]  %s175, 4096, %s177, [#allocation6], 128, 128, 8
        $region20: #{rotary_position_embedding.1} parent=11 // pred_fallthru
          _
      $region12: #{rotary_position_embedding.1} parent=5 // pred_fallthru
        _
      %p183 = scmp.lt.s32.totalorder %s16, 2
      // Predicated region
      $region21: #{rotary_position_embedding.1} parent=5 // pred_check
        %p184 = pneg %p183
      $region22: #{rotary_position_embedding.1} parent=5 // pred_check_branch
        %186 = sbr.rel (%p184) target = $region24
      $region23: #{rotary_position_embedding.1} parent=5 // pred_region
        // Predicated region
        $region25: #{rotary_position_embedding.1} parent=23 // pred_check
          %p187 = pneg %p50
        $region26: #{rotary_position_embedding.1} parent=23 // pred_check_branch
          %189 = sbr.rel (%p187) target = $region28
        $region27: #{rotary_position_embedding.1} parent=23 // pred_region
          %s190 = sand.u32 %s40, 1
          %s191 = scalar_lea.sflag [#allocation3], %s190
          %s192 = sand.u32 %s40, 1
          %s193 = smul.addr %s192, 512
          %s194 = scalar_lea.vmem [#allocation2], %s193
          %s195 = smul.u32 32, %s23
          %s197 = ssub.s32 8192, 8192
          %198 = vsyncadd %s191, %s197
          %s199 = smul.addr %s195, 2
          %s200 = smul.addr %s24, 64
          %s201 = sadd.s32 %s199, %s200
          %s202 = smul.addr %s201, 128
          %s203 = scalar_lea.hbm %s0, %s202
          %s204 = sshll.u32 %s194, 4
          %s205 = int_to_ptr.vmem [resolvable:$true] %s204
          %210 = dma.hbm_to_vmem [thread:$0]  %s203, 8192, %s205, %s191, 256, 256, 16
        $region28: #{rotary_position_embedding.1} parent=23 // pred_fallthru
          _
      $region24: #{rotary_position_embedding.1} parent=5 // pred_fallthru
        _
      %p211 = scmp.le.s32.totalorder 1, %s16
      %p212 = scmp.lt.s32.totalorder %s16, 3
      %p213 = pnand %p211, %p212
      %p214 = pneg %p213
      // Predicated region
      $region29: #{rotary_position_embedding.1} parent=5 // pred_check
        _
      $region30: #{rotary_position_embedding.1} parent=5 // pred_check_branch
        %216 = sbr.rel (%p213) target = $region32
      $region31: #{rotary_position_embedding.1} parent=5 // pred_region
        %s217 = ssub.s32 %s16, 1
        %s218 = sand.u32 %s43, 1
        %s219 = scalar_lea.sflag [#allocation3], %s218
        %s220 = sand.u32 %s43, 1
        %s221 = smul.addr %s220, 512
        %s222 = scalar_lea.vmem [#allocation2], %s221
        // Predicated region
        $region33: #{rotary_position_embedding.1} parent=31 // pred_check
          %p223 = pneg %p56
        $region34: #{rotary_position_embedding.1} parent=31 // pred_check_branch
          %225 = sbr.rel (%p223) target = $region36
        $region35: #{rotary_position_embedding.1} parent=31 // pred_region
          %226 = dma.done %s219, 8192
        $region36: #{rotary_position_embedding.1} parent=31 // pred_fallthru
          _
        // Predicated region
        $region37: #{rotary_position_embedding.1} parent=31 // pred_check
          %p227 = pneg %p82
        $region38: #{rotary_position_embedding.1} parent=31 // pred_check_branch
          %229 = sbr.rel (%p227) target = $region40
        $region39: #{rotary_position_embedding.1} parent=31 // pred_region
          %230 = dma.done [#allocation6], 4096
        $region40: #{rotary_position_embedding.1} parent=31 // pred_fallthru
          _
        // Predicated region
        $region41: #{rotary_position_embedding.1} parent=31 // pred_check
          %p231 = pneg %p108
        $region42: #{rotary_position_embedding.1} parent=31 // pred_check_branch
          %233 = sbr.rel (%p231) target = $region44
        $region43: #{rotary_position_embedding.1} parent=31 // pred_region
          %234 = dma.done [#allocation6], 4096
        $region44: #{rotary_position_embedding.1} parent=31 // pred_fallthru
          _
        %s235 = sand.u32 %s43, 1
        %s236 = scalar_lea.sflag [#allocation3], %s235
        %s237 = sand.u32 %s43, 1
        %s238 = smul.addr %s237, 512
        %s239 = scalar_lea.vmem [#allocation2], %s238
        %p240 = pneg %p56
        %p241 = pneg %p53
        %p242 = pneg %p82
        %p243 = pneg %p79
        %p244 = pneg %p108
        %p245 = pneg %p105
        %p246 = pneg %p136
        %p247 = pneg %p133
        %s248 = sand.u32 %s123, 1
        %s249 = scalar_lea.sflag [#allocation4], %s248
        %s250 = sand.u32 %s123, 1
        %s251 = smul.addr %s250, 512
        %s252 = scalar_lea.vmem [#allocation8], %s251
        %s253 = smul.u32 32, %s25
        %s254 = smul.u32 32, %s25
        %s255 = smul.u32 32, %s25
        %s256 = smul.u32 32, %s25
        %v257 = vld [vmem:[#allocation5] sm:$0xff]
        %v258 = vld [vmem:[#allocation5 + $0x8] sm:$0xff]
        %v259 = vld [vmem:[#allocation5 + $0x10] sm:$0xff]
        %v260 = vld [vmem:[#allocation5 + $0x18] sm:$0xff]
        %v261 = vld [vmem:[#allocation5 + $0x20] sm:$0xff]
        %v262 = vld [vmem:[#allocation5 + $0x28] sm:$0xff]
        %v263 = vld [vmem:[#allocation5 + $0x30] sm:$0xff]
        %v264 = vld [vmem:[#allocation5 + $0x38] sm:$0xff]
        %v265 = vld [vmem:[#allocation5 + $0x40] sm:$0xff]
        %v266 = vld [vmem:[#allocation5 + $0x48] sm:$0xff]
        %v267 = vld [vmem:[#allocation5 + $0x50] sm:$0xff]
        %v268 = vld [vmem:[#allocation5 + $0x58] sm:$0xff]
        %v269 = vld [vmem:[#allocation5 + $0x60] sm:$0xff]
        %v270 = vld [vmem:[#allocation5 + $0x68] sm:$0xff]
        %v271 = vld [vmem:[#allocation5 + $0x70] sm:$0xff]
        %v272 = vld [vmem:[#allocation5 + $0x78] sm:$0xff]
        %v273 = vld [vmem:[#allocation5 + $0x80] sm:$0xff]
        %v274 = vld [vmem:[#allocation5 + $0x88] sm:$0xff]
        %v275 = vld [vmem:[#allocation5 + $0x90] sm:$0xff]
        %v276 = vld [vmem:[#allocation5 + $0x98] sm:$0xff]
        %v277 = vld [vmem:[#allocation5 + $0xa0] sm:$0xff]
        %v278 = vld [vmem:[#allocation5 + $0xa8] sm:$0xff]
        %v279 = vld [vmem:[#allocation5 + $0xb0] sm:$0xff]
        %v280 = vld [vmem:[#allocation5 + $0xb8] sm:$0xff]
        %v281 = vld [vmem:[#allocation5 + $0xc0] sm:$0xff]
        %v282 = vld [vmem:[#allocation5 + $0xc8] sm:$0xff]
        %v283 = vld [vmem:[#allocation5 + $0xd0] sm:$0xff]
        %v284 = vld [vmem:[#allocation5 + $0xd8] sm:$0xff]
        %v285 = vld [vmem:[#allocation5 + $0xe0] sm:$0xff]
        %v286 = vld [vmem:[#allocation5 + $0xe8] sm:$0xff]
        %v287 = vld [vmem:[#allocation5 + $0xf0] sm:$0xff]
        %v288 = vld [vmem:[#allocation5 + $0xf8] sm:$0xff]
        %v289 = vld [vmem:[#allocation7] sm:$0xff]
        %v290 = vld [vmem:[#allocation7 + $0x8] sm:$0xff]
        %v291 = vld [vmem:[#allocation7 + $0x10] sm:$0xff]
        %v292 = vld [vmem:[#allocation7 + $0x18] sm:$0xff]
        %v293 = vld [vmem:[#allocation7 + $0x20] sm:$0xff]
        %v294 = vld [vmem:[#allocation7 + $0x28] sm:$0xff]
        %v295 = vld [vmem:[#allocation7 + $0x30] sm:$0xff]
        %v296 = vld [vmem:[#allocation7 + $0x38] sm:$0xff]
        %v297 = vld [vmem:[#allocation7 + $0x40] sm:$0xff]
        %v298 = vld [vmem:[#allocation7 + $0x48] sm:$0xff]
        %v299 = vld [vmem:[#allocation7 + $0x50] sm:$0xff]
        %v300 = vld [vmem:[#allocation7 + $0x58] sm:$0xff]
        %v301 = vld [vmem:[#allocation7 + $0x60] sm:$0xff]
        %v302 = vld [vmem:[#allocation7 + $0x68] sm:$0xff]
        %v303 = vld [vmem:[#allocation7 + $0x70] sm:$0xff]
        %v304 = vld [vmem:[#allocation7 + $0x78] sm:$0xff]
        %v305 = vld [vmem:[#allocation7 + $0x80] sm:$0xff]
        %v306 = vld [vmem:[#allocation7 + $0x88] sm:$0xff]
        %v307 = vld [vmem:[#allocation7 + $0x90] sm:$0xff]
        %v308 = vld [vmem:[#allocation7 + $0x98] sm:$0xff]
        %v309 = vld [vmem:[#allocation7 + $0xa0] sm:$0xff]
        %v310 = vld [vmem:[#allocation7 + $0xa8] sm:$0xff]
        %v311 = vld [vmem:[#allocation7 + $0xb0] sm:$0xff]
        %v312 = vld [vmem:[#allocation7 + $0xb8] sm:$0xff]
        %v313 = vld [vmem:[#allocation7 + $0xc0] sm:$0xff]
        %v314 = vld [vmem:[#allocation7 + $0xc8] sm:$0xff]
        %v315 = vld [vmem:[#allocation7 + $0xd0] sm:$0xff]
        %v316 = vld [vmem:[#allocation7 + $0xd8] sm:$0xff]
        %v317 = vld [vmem:[#allocation7 + $0xe0] sm:$0xff]
        %v318 = vld [vmem:[#allocation7 + $0xe8] sm:$0xff]
        %v319 = vld [vmem:[#allocation7 + $0xf0] sm:$0xff]
        %v320 = vld [vmem:[#allocation7 + $0xf8] sm:$0xff]
        %v321 = vld [vmem:[%s222] sm:$0xff]
        %v322 = vld [vmem:[%s222 + $0x10] sm:$0xff]
        %v323 = vld [vmem:[%s222 + $0x20] sm:$0xff]
        %v324 = vld [vmem:[%s222 + $0x30] sm:$0xff]
        %v325 = vld [vmem:[%s222 + $0x40] sm:$0xff]
        %v326 = vld [vmem:[%s222 + $0x50] sm:$0xff]
        %v327 = vld [vmem:[%s222 + $0x60] sm:$0xff]
        %v328 = vld [vmem:[%s222 + $0x70] sm:$0xff]
        %v329 = vld [vmem:[%s222 + $0x80] sm:$0xff]
        %v330 = vld [vmem:[%s222 + $0x90] sm:$0xff]
        %v331 = vld [vmem:[%s222 + $0xa0] sm:$0xff]
        %v332 = vld [vmem:[%s222 + $0xb0] sm:$0xff]
        %v333 = vld [vmem:[%s222 + $0xc0] sm:$0xff]
        %v334 = vld [vmem:[%s222 + $0xd0] sm:$0xff]
        %v335 = vld [vmem:[%s222 + $0xe0] sm:$0xff]
        %v336 = vld [vmem:[%s222 + $0xf0] sm:$0xff]
        %v337 = vld [vmem:[%s222 + $0x100] sm:$0xff]
        %v338 = vld [vmem:[%s222 + $0x110] sm:$0xff]
        %v339 = vld [vmem:[%s222 + $0x120] sm:$0xff]
        %v340 = vld [vmem:[%s222 + $0x130] sm:$0xff]
        %v341 = vld [vmem:[%s222 + $0x140] sm:$0xff]
        %v342 = vld [vmem:[%s222 + $0x150] sm:$0xff]
        %v343 = vld [vmem:[%s222 + $0x160] sm:$0xff]
        %v344 = vld [vmem:[%s222 + $0x170] sm:$0xff]
        %v345 = vld [vmem:[%s222 + $0x180] sm:$0xff]
        %v346 = vld [vmem:[%s222 + $0x190] sm:$0xff]
        %v347 = vld [vmem:[%s222 + $0x1a0] sm:$0xff]
        %v348 = vld [vmem:[%s222 + $0x1b0] sm:$0xff]
        %v349 = vld [vmem:[%s222 + $0x1c0] sm:$0xff]
        %v350 = vld [vmem:[%s222 + $0x1d0] sm:$0xff]
        %v351 = vld [vmem:[%s222 + $0x1e0] sm:$0xff]
        %v352 = vld [vmem:[%s222 + $0x1f0] sm:$0xff]
        %v353 = vld [vmem:[%s222 + $0x8] sm:$0xff]
        %v354 = vld [vmem:[%s222 + $0x18] sm:$0xff]
        %v355 = vld [vmem:[%s222 + $0x28] sm:$0xff]
        %v356 = vld [vmem:[%s222 + $0x38] sm:$0xff]
        %v357 = vld [vmem:[%s222 + $0x48] sm:$0xff]
        %v358 = vld [vmem:[%s222 + $0x58] sm:$0xff]
        %v359 = vld [vmem:[%s222 + $0x68] sm:$0xff]
        %v360 = vld [vmem:[%s222 + $0x78] sm:$0xff]
        %v361 = vld [vmem:[%s222 + $0x88] sm:$0xff]
        %v362 = vld [vmem:[%s222 + $0x98] sm:$0xff]
        %v363 = vld [vmem:[%s222 + $0xa8] sm:$0xff]
        %v364 = vld [vmem:[%s222 + $0xb8] sm:$0xff]
        %v365 = vld [vmem:[%s222 + $0xc8] sm:$0xff]
        %v366 = vld [vmem:[%s222 + $0xd8] sm:$0xff]
        %v367 = vld [vmem:[%s222 + $0xe8] sm:$0xff]
        %v368 = vld [vmem:[%s222 + $0xf8] sm:$0xff]
        %v369 = vld [vmem:[%s222 + $0x108] sm:$0xff]
        %v370 = vld [vmem:[%s222 + $0x118] sm:$0xff]
        %v371 = vld [vmem:[%s222 + $0x128] sm:$0xff]
        %v372 = vld [vmem:[%s222 + $0x138] sm:$0xff]
        %v373 = vld [vmem:[%s222 + $0x148] sm:$0xff]
        %v374 = vld [vmem:[%s222 + $0x158] sm:$0xff]
        %v375 = vld [vmem:[%s222 + $0x168] sm:$0xff]
        %v376 = vld [vmem:[%s222 + $0x178] sm:$0xff]
        %v377 = vld [vmem:[%s222 + $0x188] sm:$0xff]
        %v378 = vld [vmem:[%s222 + $0x198] sm:$0xff]
        %v379 = vld [vmem:[%s222 + $0x1a8] sm:$0xff]
        %v380 = vld [vmem:[%s222 + $0x1b8] sm:$0xff]
        %v381 = vld [vmem:[%s222 + $0x1c8] sm:$0xff]
        %v382 = vld [vmem:[%s222 + $0x1d8] sm:$0xff]
        %v383 = vld [vmem:[%s222 + $0x1e8] sm:$0xff]
        %v384 = vld [vmem:[%s222 + $0x1f8] sm:$0xff]
        %v385 = vmul.f32 %v321, %v257
        %v386 = vmul.f32 %v322, %v258
        %v387 = vmul.f32 %v323, %v259
        %v388 = vmul.f32 %v324, %v260
        %v389 = vmul.f32 %v325, %v261
        %v390 = vmul.f32 %v326, %v262
        %v391 = vmul.f32 %v327, %v263
        %v392 = vmul.f32 %v328, %v264
        %v393 = vmul.f32 %v329, %v265
        %v394 = vmul.f32 %v330, %v266
        %v395 = vmul.f32 %v331, %v267
        %v396 = vmul.f32 %v332, %v268
        %v397 = vmul.f32 %v333, %v269
        %v398 = vmul.f32 %v334, %v270
        %v399 = vmul.f32 %v335, %v271
        %v400 = vmul.f32 %v336, %v272
        %v401 = vmul.f32 %v337, %v273
        %v402 = vmul.f32 %v338, %v274
        %v403 = vmul.f32 %v339, %v275
        %v404 = vmul.f32 %v340, %v276
        %v405 = vmul.f32 %v341, %v277
        %v406 = vmul.f32 %v342, %v278
        %v407 = vmul.f32 %v343, %v279
        %v408 = vmul.f32 %v344, %v280
        %v409 = vmul.f32 %v345, %v281
        %v410 = vmul.f32 %v346, %v282
        %v411 = vmul.f32 %v347, %v283
        %v412 = vmul.f32 %v348, %v284
        %v413 = vmul.f32 %v349, %v285
        %v414 = vmul.f32 %v350, %v286
        %v415 = vmul.f32 %v351, %v287
        %v416 = vmul.f32 %v352, %v288
        %v417 = vmul.f32 %v353, %v289
        %v418 = vmul.f32 %v354, %v290
        %v419 = vmul.f32 %v355, %v291
        %v420 = vmul.f32 %v356, %v292
        %v421 = vmul.f32 %v357, %v293
        %v422 = vmul.f32 %v358, %v294
        %v423 = vmul.f32 %v359, %v295
        %v424 = vmul.f32 %v360, %v296
        %v425 = vmul.f32 %v361, %v297
        %v426 = vmul.f32 %v362, %v298
        %v427 = vmul.f32 %v363, %v299
        %v428 = vmul.f32 %v364, %v300
        %v429 = vmul.f32 %v365, %v301
        %v430 = vmul.f32 %v366, %v302
        %v431 = vmul.f32 %v367, %v303
        %v432 = vmul.f32 %v368, %v304
        %v433 = vmul.f32 %v369, %v305
        %v434 = vmul.f32 %v370, %v306
        %v435 = vmul.f32 %v371, %v307
        %v436 = vmul.f32 %v372, %v308
        %v437 = vmul.f32 %v373, %v309
        %v438 = vmul.f32 %v374, %v310
        %v439 = vmul.f32 %v375, %v311
        %v440 = vmul.f32 %v376, %v312
        %v441 = vmul.f32 %v377, %v313
        %v442 = vmul.f32 %v378, %v314
        %v443 = vmul.f32 %v379, %v315
        %v444 = vmul.f32 %v380, %v316
        %v445 = vmul.f32 %v381, %v317
        %v446 = vmul.f32 %v382, %v318
        %v447 = vmul.f32 %v383, %v319
        %v448 = vmul.f32 %v384, %v320
        %v449 = vsub.f32 %v385, %v417
        %v450 = vsub.f32 %v386, %v418
        %v451 = vsub.f32 %v387, %v419
        %v452 = vsub.f32 %v388, %v420
        %v453 = vsub.f32 %v389, %v421
        %v454 = vsub.f32 %v390, %v422
        %v455 = vsub.f32 %v391, %v423
        %v456 = vsub.f32 %v392, %v424
        %v457 = vsub.f32 %v393, %v425
        %v458 = vsub.f32 %v394, %v426
        %v459 = vsub.f32 %v395, %v427
        %v460 = vsub.f32 %v396, %v428
        %v461 = vsub.f32 %v397, %v429
        %v462 = vsub.f32 %v398, %v430
        %v463 = vsub.f32 %v399, %v431
        %v464 = vsub.f32 %v400, %v432
        %v465 = vsub.f32 %v401, %v433
        %v466 = vsub.f32 %v402, %v434
        %v467 = vsub.f32 %v403, %v435
        %v468 = vsub.f32 %v404, %v436
        %v469 = vsub.f32 %v405, %v437
        %v470 = vsub.f32 %v406, %v438
        %v471 = vsub.f32 %v407, %v439
        %v472 = vsub.f32 %v408, %v440
        %v473 = vsub.f32 %v409, %v441
        %v474 = vsub.f32 %v410, %v442
        %v475 = vsub.f32 %v411, %v443
        %v476 = vsub.f32 %v412, %v444
        %v477 = vsub.f32 %v413, %v445
        %v478 = vsub.f32 %v414, %v446
        %v479 = vsub.f32 %v415, %v447
        %v480 = vsub.f32 %v416, %v448
        %481 = vst [vmem:[%s252] sm:$0xff] %v449
        %482 = vst [vmem:[%s252 + $0x10] sm:$0xff] %v450
        %483 = vst [vmem:[%s252 + $0x20] sm:$0xff] %v451
        %484 = vst [vmem:[%s252 + $0x30] sm:$0xff] %v452
        %485 = vst [vmem:[%s252 + $0x40] sm:$0xff] %v453
        %486 = vst [vmem:[%s252 + $0x50] sm:$0xff] %v454
        %487 = vst [vmem:[%s252 + $0x60] sm:$0xff] %v455
        %488 = vst [vmem:[%s252 + $0x70] sm:$0xff] %v456
        %489 = vst [vmem:[%s252 + $0x80] sm:$0xff] %v457
        %490 = vst [vmem:[%s252 + $0x90] sm:$0xff] %v458
        %491 = vst [vmem:[%s252 + $0xa0] sm:$0xff] %v459
        %492 = vst [vmem:[%s252 + $0xb0] sm:$0xff] %v460
        %493 = vst [vmem:[%s252 + $0xc0] sm:$0xff] %v461
        %494 = vst [vmem:[%s252 + $0xd0] sm:$0xff] %v462
        %495 = vst [vmem:[%s252 + $0xe0] sm:$0xff] %v463
        %496 = vst [vmem:[%s252 + $0xf0] sm:$0xff] %v464
        %497 = vst [vmem:[%s252 + $0x100] sm:$0xff] %v465
        %498 = vst [vmem:[%s252 + $0x110] sm:$0xff] %v466
        %499 = vst [vmem:[%s252 + $0x120] sm:$0xff] %v467
        %500 = vst [vmem:[%s252 + $0x130] sm:$0xff] %v468
        %501 = vst [vmem:[%s252 + $0x140] sm:$0xff] %v469
        %502 = vst [vmem:[%s252 + $0x150] sm:$0xff] %v470
        %503 = vst [vmem:[%s252 + $0x160] sm:$0xff] %v471
        %504 = vst [vmem:[%s252 + $0x170] sm:$0xff] %v472
        %505 = vst [vmem:[%s252 + $0x180] sm:$0xff] %v473
        %506 = vst [vmem:[%s252 + $0x190] sm:$0xff] %v474
        %507 = vst [vmem:[%s252 + $0x1a0] sm:$0xff] %v475
        %508 = vst [vmem:[%s252 + $0x1b0] sm:$0xff] %v476
        %509 = vst [vmem:[%s252 + $0x1c0] sm:$0xff] %v477
        %510 = vst [vmem:[%s252 + $0x1d0] sm:$0xff] %v478
        %511 = vst [vmem:[%s252 + $0x1e0] sm:$0xff] %v479
        %512 = vst [vmem:[%s252 + $0x1f0] sm:$0xff] %v480
        %v513 = vmul.f32 %v353, %v257
        %v514 = vmul.f32 %v354, %v258
        %v515 = vmul.f32 %v355, %v259
        %v516 = vmul.f32 %v356, %v260
        %v517 = vmul.f32 %v357, %v261
        %v518 = vmul.f32 %v358, %v262
        %v519 = vmul.f32 %v359, %v263
        %v520 = vmul.f32 %v360, %v264
        %v521 = vmul.f32 %v361, %v265
        %v522 = vmul.f32 %v362, %v266
        %v523 = vmul.f32 %v363, %v267
        %v524 = vmul.f32 %v364, %v268
        %v525 = vmul.f32 %v365, %v269
        %v526 = vmul.f32 %v366, %v270
        %v527 = vmul.f32 %v367, %v271
        %v528 = vmul.f32 %v368, %v272
        %v529 = vmul.f32 %v369, %v273
        %v530 = vmul.f32 %v370, %v274
        %v531 = vmul.f32 %v371, %v275
        %v532 = vmul.f32 %v372, %v276
        %v533 = vmul.f32 %v373, %v277
        %v534 = vmul.f32 %v374, %v278
        %v535 = vmul.f32 %v375, %v279
        %v536 = vmul.f32 %v376, %v280
        %v537 = vmul.f32 %v377, %v281
        %v538 = vmul.f32 %v378, %v282
        %v539 = vmul.f32 %v379, %v283
        %v540 = vmul.f32 %v380, %v284
        %v541 = vmul.f32 %v381, %v285
        %v542 = vmul.f32 %v382, %v286
        %v543 = vmul.f32 %v383, %v287
        %v544 = vmul.f32 %v384, %v288
        %v545 = vmul.f32 %v321, %v289
        %v546 = vmul.f32 %v322, %v290
        %v547 = vmul.f32 %v323, %v291
        %v548 = vmul.f32 %v324, %v292
        %v549 = vmul.f32 %v325, %v293
        %v550 = vmul.f32 %v326, %v294
        %v551 = vmul.f32 %v327, %v295
        %v552 = vmul.f32 %v328, %v296
        %v553 = vmul.f32 %v329, %v297
        %v554 = vmul.f32 %v330, %v298
        %v555 = vmul.f32 %v331, %v299
        %v556 = vmul.f32 %v332, %v300
        %v557 = vmul.f32 %v333, %v301
        %v558 = vmul.f32 %v334, %v302
        %v559 = vmul.f32 %v335, %v303
        %v560 = vmul.f32 %v336, %v304
        %v561 = vmul.f32 %v337, %v305
        %v562 = vmul.f32 %v338, %v306
        %v563 = vmul.f32 %v339, %v307
        %v564 = vmul.f32 %v340, %v308
        %v565 = vmul.f32 %v341, %v309
        %v566 = vmul.f32 %v342, %v310
        %v567 = vmul.f32 %v343, %v311
        %v568 = vmul.f32 %v344, %v312
        %v569 = vmul.f32 %v345, %v313
        %v570 = vmul.f32 %v346, %v314
        %v571 = vmul.f32 %v347, %v315
        %v572 = vmul.f32 %v348, %v316
        %v573 = vmul.f32 %v349, %v317
        %v574 = vmul.f32 %v350, %v318
        %v575 = vmul.f32 %v351, %v319
        %v576 = vmul.f32 %v352, %v320
        %v577 = vadd.f32 %v513, %v545
        %v578 = vadd.f32 %v514, %v546
        %v579 = vadd.f32 %v515, %v547
        %v580 = vadd.f32 %v516, %v548
        %v581 = vadd.f32 %v517, %v549
        %v582 = vadd.f32 %v518, %v550
        %v583 = vadd.f32 %v519, %v551
        %v584 = vadd.f32 %v520, %v552
        %v585 = vadd.f32 %v521, %v553
        %v586 = vadd.f32 %v522, %v554
        %v587 = vadd.f32 %v523, %v555
        %v588 = vadd.f32 %v524, %v556
        %v589 = vadd.f32 %v525, %v557
        %v590 = vadd.f32 %v526, %v558
        %v591 = vadd.f32 %v527, %v559
        %v592 = vadd.f32 %v528, %v560
        %v593 = vadd.f32 %v529, %v561
        %v594 = vadd.f32 %v530, %v562
        %v595 = vadd.f32 %v531, %v563
        %v596 = vadd.f32 %v532, %v564
        %v597 = vadd.f32 %v533, %v565
        %v598 = vadd.f32 %v534, %v566
        %v599 = vadd.f32 %v535, %v567
        %v600 = vadd.f32 %v536, %v568
        %v601 = vadd.f32 %v537, %v569
        %v602 = vadd.f32 %v538, %v570
        %v603 = vadd.f32 %v539, %v571
        %v604 = vadd.f32 %v540, %v572
        %v605 = vadd.f32 %v541, %v573
        %v606 = vadd.f32 %v542, %v574
        %v607 = vadd.f32 %v543, %v575
        %v608 = vadd.f32 %v544, %v576
        %609 = vst [vmem:[%s252 + $0x8] sm:$0xff] %v577
        %610 = vst [vmem:[%s252 + $0x18] sm:$0xff] %v578
        %611 = vst [vmem:[%s252 + $0x28] sm:$0xff] %v579
        %612 = vst [vmem:[%s252 + $0x38] sm:$0xff] %v580
        %613 = vst [vmem:[%s252 + $0x48] sm:$0xff] %v581
        %614 = vst [vmem:[%s252 + $0x58] sm:$0xff] %v582
        %615 = vst [vmem:[%s252 + $0x68] sm:$0xff] %v583
        %616 = vst [vmem:[%s252 + $0x78] sm:$0xff] %v584
        %617 = vst [vmem:[%s252 + $0x88] sm:$0xff] %v585
        %618 = vst [vmem:[%s252 + $0x98] sm:$0xff] %v586
        %619 = vst [vmem:[%s252 + $0xa8] sm:$0xff] %v587
        %620 = vst [vmem:[%s252 + $0xb8] sm:$0xff] %v588
        %621 = vst [vmem:[%s252 + $0xc8] sm:$0xff] %v589
        %622 = vst [vmem:[%s252 + $0xd8] sm:$0xff] %v590
        %623 = vst [vmem:[%s252 + $0xe8] sm:$0xff] %v591
        %624 = vst [vmem:[%s252 + $0xf8] sm:$0xff] %v592
        %625 = vst [vmem:[%s252 + $0x108] sm:$0xff] %v593
        %626 = vst [vmem:[%s252 + $0x118] sm:$0xff] %v594
        %627 = vst [vmem:[%s252 + $0x128] sm:$0xff] %v595
        %628 = vst [vmem:[%s252 + $0x138] sm:$0xff] %v596
        %629 = vst [vmem:[%s252 + $0x148] sm:$0xff] %v597
        %630 = vst [vmem:[%s252 + $0x158] sm:$0xff] %v598
        %631 = vst [vmem:[%s252 + $0x168] sm:$0xff] %v599
        %632 = vst [vmem:[%s252 + $0x178] sm:$0xff] %v600
        %633 = vst [vmem:[%s252 + $0x188] sm:$0xff] %v601
        %634 = vst [vmem:[%s252 + $0x198] sm:$0xff] %v602
        %635 = vst [vmem:[%s252 + $0x1a8] sm:$0xff] %v603
        %636 = vst [vmem:[%s252 + $0x1b8] sm:$0xff] %v604
        %637 = vst [vmem:[%s252 + $0x1c8] sm:$0xff] %v605
        %638 = vst [vmem:[%s252 + $0x1d8] sm:$0xff] %v606
        %639 = vst [vmem:[%s252 + $0x1e8] sm:$0xff] %v607
        %640 = vst [vmem:[%s252 + $0x1f8] sm:$0xff] %v608
        %s641 = sand.u32 %s123, 1
        %s642 = scalar_lea.sflag [#allocation4], %s641
        %s643 = sand.u32 %s123, 1
        %s644 = smul.addr %s643, 512
        %s645 = scalar_lea.vmem [#allocation8], %s644
        // Predicated region
        $region45: #{rotary_position_embedding.1} parent=31 // pred_check
          %p646 = pneg %p133
        $region46: #{rotary_position_embedding.1} parent=31 // pred_check_branch
          %648 = sbr.rel (%p646) target = $region48
        $region47: #{rotary_position_embedding.1} parent=31 // pred_region
          %s649 = smul.u32 32, %s25
          %s651 = ssub.s32 8192, 8192
          %652 = vsyncadd %s642, %s651
          %s653 = smul.addr %s649, 2
          %s654 = smul.addr %s26, 64
          %s655 = sadd.s32 %s653, %s654
          %s656 = smul.addr %s655, 128
          %s657 = scalar_lea.hbm %s3, %s656
          %s658 = sshll.u32 %s645, 4
          %s659 = int_to_ptr.vmem [resolvable:$true] %s658
          %664 = dma.vmem_to_hbm [thread:$0]  %s659, 8192, %s657, %s642, 256, 256, 16
        $region48: #{rotary_position_embedding.1} parent=31 // pred_fallthru
          _
      $region32: #{rotary_position_embedding.1} parent=5 // pred_fallthru
        _
      %p665 = scmp.le.s32.totalorder 2, %s16
      // Predicated region
      $region49: #{rotary_position_embedding.1} parent=5 // pred_check
        %p666 = pneg %p665
      $region50: #{rotary_position_embedding.1} parent=5 // pred_check_branch
        %668 = sbr.rel (%p666) target = $region52
      $region51: #{rotary_position_embedding.1} parent=5 // pred_region
        %s669 = ssub.s32 %s16, 2
        // Predicated region
        $region53: #{rotary_position_embedding.1} parent=51 // pred_check
          %p670 = pneg %p139
        $region54: #{rotary_position_embedding.1} parent=51 // pred_check_branch
          %672 = sbr.rel (%p670) target = $region56
        $region55: #{rotary_position_embedding.1} parent=51 // pred_region
          %s673 = sand.u32 %s124, 1
          %s674 = scalar_lea.sflag [#allocation4], %s673
          %s675 = sand.u32 %s124, 1
          %s676 = smul.addr %s675, 512
          %s677 = scalar_lea.vmem [#allocation8], %s676
          %678 = dma.done %s674, 8192
        $region56: #{rotary_position_embedding.1} parent=51 // pred_fallthru
          _
      $region52: #{rotary_position_embedding.1} parent=5 // pred_fallthru
        _
    $region6: #{rotary_position_embedding.1} parent=1 // loop_footer
      %s20 = sadd.s32 1, %s16
    $region7: #{rotary_position_embedding.1} parent=1 // loop_footer_branch
      %15 = sbr.rel target = $region3
    $region8: #{rotary_position_embedding.1} parent=1 // loop_exit
      _
    %679 = vsyncpa [#allocation3], 1
    %s680 = scalar_lea.sflag [#allocation3], 1
    %681 = vsyncpa %s680, 1
    %682 = vsyncpa [#allocation6], 1
    %683 = vsyncpa [#allocation4], 1
    %s684 = scalar_lea.sflag [#allocation4], 1
    %685 = vsyncpa %s684, 1

</llo_original>
